<compile_context>
chip_gen: v7x
topology: tpu7x:2x2x1
jax: 0.10.0
libtpu: 0.0.40
codegen_flags: <defaults>
</compile_context>

<pallas_src>
import functools

import numpy as np
import jax
import jax.numpy as jnp
from jax import lax
from jax.experimental import pallas as pl
from jax.experimental.pallas import tpu as pltpu


# ----------------------------- kernel ----------------------------------------


def _rbf_sym_tile_kernel(ii_ref, jj_ref, scales_ref,
                         xi_ref, xjT_ref, sqi_ref, sqj_ref,
                         out_ref, acc_ref, *, n_kernels, pow2_ladder):
    """One grid step.

    m == 0: compute the (tile, tile) kernel-sum tile for tile pair (ii, jj),
            write it to out (ii, jj) and keep it in acc_ref.
    m == 1: write the transposed tile to out (jj, ii) (mirror of the symmetric gram).
            For diagonal tile pairs both writes land on the same block.
    """
    t = pl.program_id(0)
    m = pl.program_id(1)

    @pl.when(m == 0)
    def _compute():
        # Canonical (M, K) x (K, N) MXU feed; inputs may be bf16, accumulate in f32.
        gram = lax.dot_general(
            xi_ref[...], xjT_ref[...],
            dimension_numbers=(((1,), (0,)), ((), ())),
            preferred_element_type=jnp.float32)
        l2 = jnp.maximum(sqi_ref[...] + sqj_ref[...] - 2.0 * gram, 0.0)

        # Exact zeros on the global diagonal (fixes bf16 rounding there, ~2 VALU ops).
        on_diag_tile = ii_ref[t] == jj_ref[t]
        row = lax.broadcasted_iota(jnp.int32, l2.shape, 0)
        col = lax.broadcasted_iota(jnp.int32, l2.shape, 1)
        l2 = jnp.where(jnp.logical_and(on_diag_tile, row == col), 0.0, l2)

        if pow2_ladder:
            # scales_ref[0] = -1 / (bw * max_mult); other bandwidths by squaring.
            base = jnp.exp(l2 * scales_ref[0])      # single EUP pass per element
            acc = base
            term = base
            for _ in range(n_kernels - 1):
                term = term * term
                acc = acc + term
        else:
            acc = jnp.exp(l2 * scales_ref[0])
            for k in range(1, n_kernels):
                acc = acc + jnp.exp(l2 * scales_ref[k])

        acc_ref[...] = acc
        out_ref[...] = acc.astype(out_ref.dtype)

    @pl.when(m == 1)
    def _mirror():
        # XLU transpose of the cached tile; MXU/VPU/EUP stay free for the next pair.
        out_ref[...] = jnp.transpose(acc_ref[...]).astype(out_ref.dtype)


# ----------------------------- wrapper ----------------------------------------


def _is_pow2_ladder(mults_np):
    m = np.sort(np.asarray(mults_np, dtype=np.float64))
    if not np.all(m > 0):
        return False
    if m.size < 2:
        return True
    ratios = m[1:] / m[:-1]
    return bool(np.all(np.abs(ratios - 2.0) < 1e-6))


def rbf_forward(X, bandwidth_multipliers, *, tile=None,
                dot_dtype=jnp.bfloat16, out_dtype=jnp.float32,
                pow2_ladder=None):
    """Pallas equivalent of RBF.forward (bandwidth=None path).

    Returns sum_k exp(-||x_i - x_j||^2 / (bw * mult_k)) as an (N, N) array with
    bw = sum_ij ||x_i - x_j||^2 / (N^2 - N).
    """
    X = X.astype(jnp.float32)
    mults = jnp.asarray(bandwidth_multipliers, jnp.float32)
    N, D = X.shape
    K = int(mults.shape[0])

    # Square tile (needed for the in-kernel transpose mirror); lane-dense (>=128).
    if tile is None:
        tile = 128 if N <= 384 else 256
    assert tile % 128 == 0, "tile must be a multiple of 128 (lane-dense output)"

    # ---- O(N*D) pre-pass -----------------------------------------------------
    # Center columns: pairwise distances are invariant, cancellation in
    # sq_i + sq_j - 2*gram and in the closed-form bandwidth shrinks.
    Xc = X - jnp.mean(X, axis=0, keepdims=True)
    sq = jnp.sum(Xc * Xc, axis=1)                          # (N,) f32 squared norms
    col_sum = jnp.sum(Xc, axis=0)                          # (D,) ~ 0 after centering
    sum_l2 = 2.0 * N * jnp.sum(sq) - 2.0 * jnp.sum(col_sum * col_sum)
    bw = sum_l2 / float(N * N - N)

    # ---- choose the exp-saving path (explicit flag avoids the tracing cliff) --
    if pow2_ladder is None:
        try:
            pow2_ladder = _is_pow2_ladder(np.asarray(bandwidth_multipliers))
        except Exception:   # traced multipliers -> general fallback
            pow2_ladder = False

    if pow2_ladder:
        m_max = float(np.max(np.asarray(bandwidth_multipliers, dtype=np.float64)))
        scales = jnp.reshape(-1.0 / (bw * m_max), (1,)).astype(jnp.float32)
    else:
        scales = (-1.0 / (bw * mults)).astype(jnp.float32)           # (K,)

    # ---- pad each axis to one tile (no lcm blow-up) ----------------------------
    n_pad = ((N + tile - 1) // tile) * tile
    Xp = jnp.pad(Xc, ((0, n_pad - N), (0, 0)))
    sq_p = jnp.pad(sq, (0, n_pad - N))
    Xi = Xp.astype(dot_dtype)                 # (N_pad, D)   MXU lhs
    XjT = Xp.T.astype(dot_dtype)              # (D, N_pad)   MXU rhs, pre-transposed
    sq_col = sq_p.reshape(n_pad, 1)           # (N_pad, 1)
    sq_row = sq_p.reshape(1, n_pad)           # (1, N_pad)

    # ---- upper-triangular tile pairs (symmetry) --------------------------------
    G = n_pad // tile
    ii_np, jj_np = np.triu_indices(G)
    T = int(ii_np.size)
    ii = jnp.asarray(ii_np, jnp.int32)
    jj = jnp.asarray(jj_np, jnp.int32)

    kernel = functools.partial(_rbf_sym_tile_kernel,
                               n_kernels=K, pow2_ladder=pow2_ladder)

    dot_bytes = 2 if dot_dtype == jnp.bfloat16 else 4
    cost = pl.CostEstimate(
        flops=int(2 * N * N * D + 15 * N * N),
        transcendentals=int((1 if pow2_ladder else K) * N * N),
        bytes_accessed=int(4 * n_pad * n_pad + 2 * n_pad * D * dot_bytes),
    )

    out = pl.pallas_call(
        kernel,
        out_shape=jax.ShapeDtypeStruct((n_pad, n_pad), out_dtype),
        grid_spec=pltpu.PrefetchScalarGridSpec(
            num_scalar_prefetch=2,                       # ii, jj tile-index tables
            grid=(T, 2),                                 # (tile pair, mirror)
            in_specs=[
                # scale factors -1/(bw*mult_k) live in SMEM (scalar path)
                pl.BlockSpec(memory_space=pltpu.MemorySpace.SMEM),
                pl.BlockSpec((tile, D), lambda t, m, ii, jj: (ii[t], 0)),   # X rows i
                pl.BlockSpec((D, tile), lambda t, m, ii, jj: (0, jj[t])),   # X.T cols j
                pl.BlockSpec((tile, 1), lambda t, m, ii, jj: (ii[t], 0)),   # ||x_i||^2
                pl.BlockSpec((1, tile), lambda t, m, ii, jj: (0, jj[t])),   # ||x_j||^2
            ],
            out_specs=pl.BlockSpec(
                (tile, tile),
                # m=0 -> (ii, jj) ; m=1 -> (jj, ii)   (mirror write)
                lambda t, m, ii, jj: (ii[t] + m * (jj[t] - ii[t]),
                                      jj[t] + m * (ii[t] - jj[t]))),
            scratch_shapes=[pltpu.VMEM((tile, tile), jnp.float32)],
        ),
        compiler_params=pltpu.CompilerParams(
            dimension_semantics=("parallel", "arbitrary"),
        ),
        cost_estimate=cost,
    )(ii, jj, scales, Xi, XjT, sq_col, sq_row)

    return out[:N, :N]


# ----------------------------- reference & test --------------------------------


def rbf_reference(X, bandwidth_multipliers):
    # Pure-JAX mirror of the torch module (bandwidth=None path).
    d = X[:, None, :] - X[None, :, :]
    l2 = jnp.sum(d * d, axis=-1)
    n = X.shape[0]
    bw = jnp.sum(l2) / (n * n - n)
    return jnp.exp(-l2[None, ...] /
                   (bw * bandwidth_multipliers)[:, None, None]).sum(axis=0)


if __name__ == "__main__":
    key = jax.random.PRNGKey(0)
    N, D = 300, 32                     # non-multiple of tile -> exercises padding
    X = jax.random.normal(key, (N, D), dtype=jnp.float32)

    # Deterministic "parameters" from __init__: 2.0 ** (arange(5) - 2)
    n_kernels, mul_factor = 5, 2.0
    bandwidth_multipliers = (
        mul_factor ** (jnp.arange(n_kernels, dtype=jnp.float32) - n_kernels // 2)
    )

    ref = rbf_reference(X, bandwidth_multipliers)

    # Default path: bf16 MXU inputs (3x fewer vmatmul passes). Tolerance bounded
    # by bf16 rounding of the gram term; values are in [0, K] so 5e-2 abs is ~1%.
    out = jax.block_until_ready(rbf_forward(X, bandwidth_multipliers))
    assert out.shape == (N, N)
    assert bool(jnp.allclose(out, ref, atol=5e-2, rtol=1e-2)), \
        float(jnp.max(jnp.abs(out - ref)))

    # f32 MXU inputs: tight tolerance against the dense reference.
    out32 = jax.block_until_ready(
        rbf_forward(X, bandwidth_multipliers, dot_dtype=jnp.float32))
    assert bool(jnp.allclose(out32, ref, atol=2e-4, rtol=2e-4)), \
        float(jnp.max(jnp.abs(out32 - ref)))

    # General (non power-of-two multipliers) K-exp fallback path.
    mults2 = jnp.array([0.3, 1.0, 3.7], dtype=jnp.float32)
    out2 = jax.block_until_ready(
        rbf_forward(X, mults2, dot_dtype=jnp.float32))
    ref2 = rbf_reference(X, mults2)
    assert bool(jnp.allclose(out2, ref2, atol=2e-4, rtol=2e-4)), \
        float(jnp.max(jnp.abs(out2 - ref2)))

    print("KERNEL_OK")
</pallas_src>

<mosaic_0001>
module attributes {stable_mosaic.version = 11 : i64} {
  func.func @_rbf_sym_tile_kernel(%arg0: i32, %arg1: i32, %arg2: memref<6xi32, #tpu.memory_space<smem>>, %arg3: memref<6xi32, #tpu.memory_space<smem>>, %arg4: memref<1xf32, #tpu.memory_space<smem>>, %arg5: memref<128x32xbf16, #tpu.memory_space<vmem>>, %arg6: memref<32x128xbf16, #tpu.memory_space<vmem>>, %arg7: memref<128x1xf32, #tpu.memory_space<vmem>>, %arg8: memref<1x128xf32, #tpu.memory_space<vmem>>, %arg9: memref<128x128xf32, #tpu.memory_space<vmem>>, %arg10: memref<128x128xf32, #tpu.memory_space<vmem>>) attributes {dimension_semantics = [#tpu.dimension_semantics<parallel>, #tpu.dimension_semantics<arbitrary>], iteration_bounds = array<i64: 6, 2>, scalar_prefetch = 2 : i64, scratch_operands = 1 : i64, tpu.core_type = #tpu.core_type<tc>, window_params = [{transform_indices = @transform_0, window_bounds = array<i64: 1>}, {transform_indices = @transform_1, window_bounds = array<i64: 128, 32>}, {transform_indices = @transform_2, window_bounds = array<i64: 32, 128>}, {transform_indices = @transform_3, window_bounds = array<i64: 128, 1>}, {transform_indices = @transform_4, window_bounds = array<i64: 1, 128>}, {transform_indices = @transform_5, window_bounds = array<i64: 128, 128>}]} {
    %c0_i32 = arith.constant 0 : i32
    %0 = arith.cmpi eq, %arg1, %c0_i32 : i32
    %1 = arith.extui %0 : i1 to i32
    %c0_i32_0 = arith.constant 0 : i32
    %2 = arith.cmpi ne, %1, %c0_i32_0 : i32
    scf.if %2 {
      %c0 = arith.constant 0 : index
      %c0_2 = arith.constant 0 : index
      %6 = vector.load %arg5[%c0, %c0_2] : memref<128x32xbf16, #tpu.memory_space<vmem>>, vector<128x32xbf16>
      %c0_3 = arith.constant 0 : index
      %c0_4 = arith.constant 0 : index
      %7 = vector.load %arg6[%c0_3, %c0_4] : memref<32x128xbf16, #tpu.memory_space<vmem>>, vector<32x128xbf16>
      %cst = arith.constant dense<0.000000e+00> : vector<128x128xf32>
      %8 = tpu.matmul %6, %7, %cst {dimension_numbers = #tpu.dot_dimension_numbers<[1], [0], [0], [1], [0, 0, 1, 1], [], []>} : vector<128x32xbf16>, vector<32x128xbf16>, vector<128x128xf32> -> vector<128x128xf32>
      %c0_5 = arith.constant 0 : index
      %c0_6 = arith.constant 0 : index
      %9 = vector.load %arg7[%c0_5, %c0_6] : memref<128x1xf32, #tpu.memory_space<vmem>>, vector<128x1xf32>
      %c0_7 = arith.constant 0 : index
      %c0_8 = arith.constant 0 : index
      %10 = vector.load %arg8[%c0_7, %c0_8] : memref<1x128xf32, #tpu.memory_space<vmem>>, vector<1x128xf32>
      %11 = vector.broadcast %9 : vector<128x1xf32> to vector<128x128xf32>
      %12 = vector.broadcast %10 : vector<1x128xf32> to vector<128x128xf32>
      %13 = arith.addf %11, %12 : vector<128x128xf32>
      %cst_9 = arith.constant 2.000000e+00 : f32
      %14 = vector.broadcast %cst_9 : f32 to vector<128x128xf32>
      %15 = arith.mulf %14, %8 : vector<128x128xf32>
      %16 = arith.subf %13, %15 : vector<128x128xf32>
      %cst_10 = arith.constant 0.000000e+00 : f32
      %17 = vector.broadcast %cst_10 : f32 to vector<128x128xf32>
      %18 = arith.maximumf %16, %17 : vector<128x128xf32>
      %19 = arith.index_cast %arg0 : i32 to index
      %20 = memref.load %arg2[%19] : memref<6xi32, #tpu.memory_space<smem>>
      %21 = arith.index_cast %arg0 : i32 to index
      %22 = memref.load %arg3[%21] : memref<6xi32, #tpu.memory_space<smem>>
      %23 = arith.cmpi eq, %20, %22 : i32
      %24 = tpu.iota {dimensions = array<i32: 0>} : vector<128x128xi32>
      %25 = tpu.iota {dimensions = array<i32: 1>} : vector<128x128xi32>
      %26 = arith.cmpi eq, %24, %25 : vector<128x128xi32>
      %27 = vector.broadcast %23 : i1 to vector<128x128xi1>
      %28 = arith.andi %27, %26 : vector<128x128xi1>
      %cst_11 = arith.constant 0.000000e+00 : f32
      %29 = vector.broadcast %cst_11 : f32 to vector<128x128xf32>
      %30 = arith.select %28, %29, %18 : vector<128x128xi1>, vector<128x128xf32>
      %c0_12 = arith.constant 0 : index
      %31 = memref.load %arg4[%c0_12] : memref<1xf32, #tpu.memory_space<smem>>
      %32 = vector.broadcast %31 : f32 to vector<128x128xf32>
      %33 = arith.mulf %30, %32 : vector<128x128xf32>
      %34 = math.exp %33 : vector<128x128xf32>
      %35 = arith.mulf %34, %34 : vector<128x128xf32>
      %36 = arith.addf %34, %35 : vector<128x128xf32>
      %37 = arith.mulf %35, %35 : vector<128x128xf32>
      %38 = arith.addf %36, %37 : vector<128x128xf32>
      %39 = arith.mulf %37, %37 : vector<128x128xf32>
      %40 = arith.addf %38, %39 : vector<128x128xf32>
      %41 = arith.mulf %39, %39 : vector<128x128xf32>
      %42 = arith.addf %40, %41 : vector<128x128xf32>
      %c0_13 = arith.constant 0 : index
      %c0_14 = arith.constant 0 : index
      %43 = vector.load %arg10[%c0_13, %c0_14] : memref<128x128xf32, #tpu.memory_space<vmem>>, vector<128x128xf32>
      tpu.vector_store %arg10[%c0_13, %c0_14], %42 {strides = array<i32>} : memref<128x128xf32, #tpu.memory_space<vmem>>, vector<128x128xf32>,
      %c0_15 = arith.constant 0 : index
      %c0_16 = arith.constant 0 : index
      %44 = vector.load %arg9[%c0_15, %c0_16] : memref<128x128xf32, #tpu.memory_space<vmem>>, vector<128x128xf32>
      tpu.vector_store %arg9[%c0_15, %c0_16], %42 {strides = array<i32>} : memref<128x128xf32, #tpu.memory_space<vmem>>, vector<128x128xf32>,
    } else {
    }
    %c1_i32 = arith.constant 1 : i32
    %3 = arith.cmpi eq, %arg1, %c1_i32 : i32
    %4 = arith.extui %3 : i1 to i32
    %c0_i32_1 = arith.constant 0 : i32
    %5 = arith.cmpi ne, %4, %c0_i32_1 : i32
    scf.if %5 {
      %c0 = arith.constant 0 : index
      %c0_2 = arith.constant 0 : index
      %6 = vector.load %arg10[%c0, %c0_2] : memref<128x128xf32, #tpu.memory_space<vmem>>, vector<128x128xf32>
      %7 = tpu.transpose %6, [1, 0] : vector<128x128xf32> -> vector<128x128xf32>
      %c0_3 = arith.constant 0 : index
      %c0_4 = arith.constant 0 : index
      %8 = vector.load %arg9[%c0_3, %c0_4] : memref<128x128xf32, #tpu.memory_space<vmem>>, vector<128x128xf32>
      tpu.vector_store %arg9[%c0_3, %c0_4], %7 {strides = array<i32>} : memref<128x128xf32, #tpu.memory_space<vmem>>, vector<128x128xf32>,
    } else {
    }
    return
  }
  func.func @transform_0(%arg0: i32, %arg1: i32, %arg2: memref<6xi32, #tpu.memory_space<smem>>, %arg3: memref<6xi32, #tpu.memory_space<smem>>) -> i32 {
    %c0_i32 = arith.constant 0 : i32
    %c0_i32_0 = arith.constant 0 : i32
    return %c0_i32 : i32
  }
  func.func @transform_1(%arg0: i32, %arg1: i32, %arg2: memref<6xi32, #tpu.memory_space<smem>>, %arg3: memref<6xi32, #tpu.memory_space<smem>>) -> (i32, i32) {
    %0 = arith.index_cast %arg0 : i32 to index
    %1 = memref.load %arg2[%0] : memref<6xi32, #tpu.memory_space<smem>>
    %c0_i32 = arith.constant 0 : i32
    %c0_i32_0 = arith.constant 0 : i32
    return %1, %c0_i32 : i32, i32
  }
  func.func @transform_2(%arg0: i32, %arg1: i32, %arg2: memref<6xi32, #tpu.memory_space<smem>>, %arg3: memref<6xi32, #tpu.memory_space<smem>>) -> (i32, i32) {
    %0 = arith.index_cast %arg0 : i32 to index
    %1 = memref.load %arg3[%0] : memref<6xi32, #tpu.memory_space<smem>>
    %c0_i32 = arith.constant 0 : i32
    %c0_i32_0 = arith.constant 0 : i32
    return %c0_i32, %1 : i32, i32
  }
  func.func @transform_3(%arg0: i32, %arg1: i32, %arg2: memref<6xi32, #tpu.memory_space<smem>>, %arg3: memref<6xi32, #tpu.memory_space<smem>>) -> (i32, i32) {
    %0 = arith.index_cast %arg0 : i32 to index
    %1 = memref.load %arg2[%0] : memref<6xi32, #tpu.memory_space<smem>>
    %c0_i32 = arith.constant 0 : i32
    %c0_i32_0 = arith.constant 0 : i32
    return %1, %c0_i32 : i32, i32
  }
  func.func @transform_4(%arg0: i32, %arg1: i32, %arg2: memref<6xi32, #tpu.memory_space<smem>>, %arg3: memref<6xi32, #tpu.memory_space<smem>>) -> (i32, i32) {
    %0 = arith.index_cast %arg0 : i32 to index
    %1 = memref.load %arg3[%0] : memref<6xi32, #tpu.memory_space<smem>>
    %c0_i32 = arith.constant 0 : i32
    %c0_i32_0 = arith.constant 0 : i32
    return %c0_i32, %1 : i32, i32
  }
  func.func @transform_5(%arg0: i32, %arg1: i32, %arg2: memref<6xi32, #tpu.memory_space<smem>>, %arg3: memref<6xi32, #tpu.memory_space<smem>>) -> (i32, i32) {
    %0 = arith.index_cast %arg0 : i32 to index
    %1 = memref.load %arg2[%0] : memref<6xi32, #tpu.memory_space<smem>>
    %2 = arith.index_cast %arg0 : i32 to index
    %3 = memref.load %arg3[%2] : memref<6xi32, #tpu.memory_space<smem>>
    %4 = arith.index_cast %arg0 : i32 to index
    %5 = memref.load %arg2[%4] : memref<6xi32, #tpu.memory_space<smem>>
    %6 = arith.subi %3, %5 : i32
    %7 = arith.muli %arg1, %6 : i32
    %8 = arith.addi %1, %7 : i32
    %9 = arith.index_cast %arg0 : i32 to index
    %10 = memref.load %arg3[%9] : memref<6xi32, #tpu.memory_space<smem>>
    %11 = arith.index_cast %arg0 : i32 to index
    %12 = memref.load %arg2[%11] : memref<6xi32, #tpu.memory_space<smem>>
    %13 = arith.index_cast %arg0 : i32 to index
    %14 = memref.load %arg3[%13] : memref<6xi32, #tpu.memory_space<smem>>
    %15 = arith.subi %12, %14 : i32
    %16 = arith.muli %arg1, %15 : i32
    %17 = arith.addi %10, %16 : i32
    %c0_i32 = arith.constant 0 : i32
    return %8, %17 : i32, i32
  }
}

</mosaic_0001>

<llo_original>
// kernel: tpu_custom_call.1
$region0: #{tpu_custom_call.1}
  #allocation0 [shape = 'u32[]', space=smem, size = 0x4, offset = 0x4, fixed_abs, tag = 'smem constant byte address 0x4 - core index']
  #allocation1 [shape = 'u32[144,128]{1,0:T(1,128)}', space=vmem, size = 0x12000, scoped, tag = 'internal scratch']
  #allocation2 [shape = 'f32[128,128]{1,0:T(8,128)}', space=vmem, size = 0x10000, scoped, tag = 'scratch operand']
  #allocation3 [shape = 's32[1]{0}', space=sflag, size = 0x4, scoped, tag = 'scoped memory for tpu_custom_call.1']
  #allocation4 [shape = 'u8[512]{0}', space=smem, size = 0x200, scoped, tag = 'prefetched SMEM operand 0']
  #allocation5 [shape = 'u8[512]{0}', space=smem, size = 0x200, scoped, tag = 'prefetched SMEM operand 1']
  #allocation6 [shape = 'f32[1]{0:T(128)S(6)}', space=smem, size = 0x200, scoped, tag = 'scoped memory for tpu_custom_call.1']
  %s0 = inlined_call_operand.vmem [shape: s32[6], index: 0, kind: input, shape index: {}]
  %s1 = inlined_call_operand.vmem [shape: s32[6], index: 1, kind: input, shape index: {}]
  %s2 = inlined_call_operand.<no memory space> [shape: f32[1], index: 2, kind: input, shape index: {}]
  %s3 = inlined_call_operand.vmem [shape: bf16[384,32], index: 3, kind: input, shape index: {}]
  %s4 = inlined_call_operand.vmem [shape: bf16[32,384], index: 4, kind: input, shape index: {}]
  %s5 = inlined_call_operand.vmem [shape: f32[384,1], index: 5, kind: input, shape index: {}]
  %s6 = inlined_call_operand.vmem [shape: f32[1,384], index: 6, kind: input, shape index: {}]
  %s7 = inlined_call_operand.hbm [shape: f32[384,384], index: 7, kind: output, shape index: {}]
  %s8 = sld [smem:[#allocation0]]
  $region102: #{tpu_custom_call.1} parent=0
    _
  %s10 = ssub.s32 1, %s8
  %s11 = scalar_select 0, %s10, %s8
  %s12 = sshll.u32 %s0, 4
  %s13 = int_to_ptr.vmem [resolvable:$true] %s12
  %15 = dma.vmem_to_smem %s13, 16, [#allocation4], [#allocation3]
  %s16 = sshll.u32 %s1, 4
  %s17 = int_to_ptr.vmem [resolvable:$true] %s16
  %19 = dma.vmem_to_smem %s17, 16, [#allocation5], [#allocation3]
  %20 = sst [smem:[#allocation6]] %s2
  %21 = dma.done [#allocation3], 32
  %22 = sfence
  $region1: #{tpu_custom_call.1} parent=0
    #allocation7 [shape = 'u8[16384]{0}', space=vmem, size = 0x4000, scoped, tag = 'input window, operand 4']
    #allocation8 [shape = 'u8[131072]{0}', space=vmem, size = 0x20000, scoped, tag = 'output window, operand 0']
    #allocation9 [shape = 's32[2]{0}', space=sflag, size = 0x8, scoped, tag = 'scoped memory for tpu_custom_call.1']
    %23 = vsyncpa [#allocation9], 0
    %s24 = scalar_lea.sflag [#allocation9], 1
    %25 = vsyncpa %s24, 0
    loop: start=0, step=1, limit=14
    $region2: #{tpu_custom_call.1} parent=1 // loop_pre_header
      _
    $region3: #{tpu_custom_call.1} parent=1 // loop_header
      %s27 = sphi 0, %s31
      %p28 = scmp.ge.s32.totalorder %s27, 14
      %s34 = sphi 0, %s46
      %s35 = sphi 0, %s42
      %s36 = sphi 0, %s34
      %s37 = sphi 0, %s35
      %s38 = sphi 0, %s36
      %s39 = sphi 0, %s37
      %s47 = sphi 0, %s47
      %s49 = sphi 0, %s47
      %s50 = sphi 0, %s49
      %s64 = sphi 0, %s50
      %s72 = sphi 0, %s74
      %s75 = sphi 0, %s72
      %s76 = sphi 0, %s75
      %s92 = sphi 0, %s76
      %s100 = sphi 0, %s102
      %s103 = sphi 0, %s100
      %s104 = sphi 0, %s103
      %s120 = sphi 0, %s104
      %s128 = sphi 0, %s130
      %s131 = sphi 0, %s128
      %s132 = sphi 0, %s131
      %s148 = sphi 0, %s132
      %s156 = sphi 0, %s158
      %s159 = sphi 0, %s156
      %s160 = sphi 0, %s159
      %s176 = sphi 0, %s160
      %s200 = sphi 0, %s202
      %s203 = sphi 0, %s200
      %s204 = sphi 0, %s203
      %s220 = sphi 0, %s204
    $region4: #{tpu_custom_call.1} parent=1 // loop_header_branch
      %30 = sbr.rel (%p28) target = $region8
    $region5: #{tpu_custom_call.1} parent=1 // loop_body
      %s32 = ssub.s32 %s27, 1
      %s33 = ssub.s32 %s27, 2
      %s40 = sadd.s32 1, %s35
      %p41 = scmp.ge.s32.totalorder %s40, 2
      %s42 = scalar_select %p41, 0, %s40
      %s43 = sadd.s32 1, %s34
      %s44 = scalar_select %p41, %s43, %s34
      %p45 = scmp.ge.s32.totalorder %s44, 6
      %s46 = scalar_select %p45, 0, %s44
      %s48 = sadd.s32 %s47, 1
      %p51 = scmp.eq.s32.totalorder %s27, 11
      %p52 = scmp.ne.s32.totalorder %s47, %s49
      %p53 = scmp.eq.s32.totalorder %s27, 0
      %p54 = por %p52, %p53
      %p55 = scmp.ne.s32.totalorder %s47, %s49
      %p56 = scmp.eq.s32.totalorder %s32, 11
      %p57 = por %p55, %p56
      %p58 = scmp.ne.s32.totalorder %s49, %s50
      %p59 = scmp.eq.s32.totalorder %s32, 0
      %p60 = por %p58, %p59
      %p61 = scmp.ne.s32.totalorder %s49, %s50
      %p62 = scmp.eq.s32.totalorder %s33, 11
      %p63 = por %p61, %p62
      %p65 = scmp.ne.s32.totalorder %s50, %s64
      %p66 = scmp.eq.s32.totalorder %s33, 0
      %p67 = por %p65, %p66
      %s68 = sld [smem:[#allocation4 + %s34]]
      %s69 = sld [smem:[#allocation4 + %s46]]
      %s70 = ssub.s32 %s68, %s69
      %p71 = scmp.eq.s32.totalorder %s70, 0
      %s73 = sadd.s32 %s72, 1
      %s74 = scalar_select %p71, %s72, %s73
      %p77 = pneg %p71
      %p78 = scmp.eq.s32.totalorder %s27, 11
      %p79 = por %p77, %p78
      %p80 = scmp.ne.s32.totalorder %s72, %s75
      %p81 = scmp.eq.s32.totalorder %s27, 0
      %p82 = por %p80, %p81
      %p83 = scmp.ne.s32.totalorder %s72, %s75
      %p84 = scmp.eq.s32.totalorder %s32, 11
      %p85 = por %p83, %p84
      %p86 = scmp.ne.s32.totalorder %s75, %s76
      %p87 = scmp.eq.s32.totalorder %s32, 0
      %p88 = por %p86, %p87
      %p89 = scmp.ne.s32.totalorder %s75, %s76
      %p90 = scmp.eq.s32.totalorder %s33, 11
      %p91 = por %p89, %p90
      %p93 = scmp.ne.s32.totalorder %s76, %s92
      %p94 = scmp.eq.s32.totalorder %s33, 0
      %p95 = por %p93, %p94
      %s96 = sld [smem:[#allocation5 + %s34]]
      %s97 = sld [smem:[#allocation5 + %s46]]
      %s98 = ssub.s32 %s96, %s97
      %p99 = scmp.eq.s32.totalorder %s98, 0
      %s101 = sadd.s32 %s100, 1
      %s102 = scalar_select %p99, %s100, %s101
      %p105 = pneg %p99
      %p106 = scmp.eq.s32.totalorder %s27, 11
      %p107 = por %p105, %p106
      %p108 = scmp.ne.s32.totalorder %s100, %s103
      %p109 = scmp.eq.s32.totalorder %s27, 0
      %p110 = por %p108, %p109
      %p111 = scmp.ne.s32.totalorder %s100, %s103
      %p112 = scmp.eq.s32.totalorder %s32, 11
      %p113 = por %p111, %p112
      %p114 = scmp.ne.s32.totalorder %s103, %s104
      %p115 = scmp.eq.s32.totalorder %s32, 0
      %p116 = por %p114, %p115
      %p117 = scmp.ne.s32.totalorder %s103, %s104
      %p118 = scmp.eq.s32.totalorder %s33, 11
      %p119 = por %p117, %p118
      %p121 = scmp.ne.s32.totalorder %s104, %s120
      %p122 = scmp.eq.s32.totalorder %s33, 0
      %p123 = por %p121, %p122
      %s124 = sld [smem:[#allocation4 + %s34]]
      %s125 = sld [smem:[#allocation4 + %s46]]
      %s126 = ssub.s32 %s124, %s125
      %p127 = scmp.eq.s32.totalorder %s126, 0
      %s129 = sadd.s32 %s128, 1
      %s130 = scalar_select %p127, %s128, %s129
      %p133 = pneg %p127
      %p134 = scmp.eq.s32.totalorder %s27, 11
      %p135 = por %p133, %p134
      %p136 = scmp.ne.s32.totalorder %s128, %s131
      %p137 = scmp.eq.s32.totalorder %s27, 0
      %p138 = por %p136, %p137
      %p139 = scmp.ne.s32.totalorder %s128, %s131
      %p140 = scmp.eq.s32.totalorder %s32, 11
      %p141 = por %p139, %p140
      %p142 = scmp.ne.s32.totalorder %s131, %s132
      %p143 = scmp.eq.s32.totalorder %s32, 0
      %p144 = por %p142, %p143
      %p145 = scmp.ne.s32.totalorder %s131, %s132
      %p146 = scmp.eq.s32.totalorder %s33, 11
      %p147 = por %p145, %p146
      %p149 = scmp.ne.s32.totalorder %s132, %s148
      %p150 = scmp.eq.s32.totalorder %s33, 0
      %p151 = por %p149, %p150
      %s152 = sld [smem:[#allocation5 + %s34]]
      %s153 = sld [smem:[#allocation5 + %s46]]
      %s154 = ssub.s32 %s152, %s153
      %p155 = scmp.eq.s32.totalorder %s154, 0
      %s157 = sadd.s32 %s156, 1
      %s158 = scalar_select %p155, %s156, %s157
      %p161 = pneg %p155
      %p162 = scmp.eq.s32.totalorder %s27, 11
      %p163 = por %p161, %p162
      %p164 = scmp.ne.s32.totalorder %s156, %s159
      %p165 = scmp.eq.s32.totalorder %s27, 0
      %p166 = por %p164, %p165
      %p167 = scmp.ne.s32.totalorder %s156, %s159
      %p168 = scmp.eq.s32.totalorder %s32, 11
      %p169 = por %p167, %p168
      %p170 = scmp.ne.s32.totalorder %s159, %s160
      %p171 = scmp.eq.s32.totalorder %s32, 0
      %p172 = por %p170, %p171
      %p173 = scmp.ne.s32.totalorder %s159, %s160
      %p174 = scmp.eq.s32.totalorder %s33, 11
      %p175 = por %p173, %p174
      %p177 = scmp.ne.s32.totalorder %s160, %s176
      %p178 = scmp.eq.s32.totalorder %s33, 0
      %p179 = por %p177, %p178
      %s180 = sld [smem:[#allocation4 + %s34]]
      %s181 = sld [smem:[#allocation5 + %s34]]
      %s182 = ssub.s32 %s181, %s180
      %s183 = smul.u32 %s35, %s182
      %s184 = sadd.s32 %s180, %s183
      %s185 = ssub.s32 %s180, %s181
      %s186 = smul.u32 %s35, %s185
      %s187 = sadd.s32 %s181, %s186
      %s188 = sld [smem:[#allocation4 + %s46]]
      %s189 = sld [smem:[#allocation5 + %s46]]
      %s190 = ssub.s32 %s189, %s188
      %s191 = smul.u32 %s42, %s190
      %s192 = sadd.s32 %s188, %s191
      %s193 = ssub.s32 %s188, %s189
      %s194 = smul.u32 %s42, %s193
      %s195 = sadd.s32 %s189, %s194
      %s196 = ssub.s32 %s184, %s192
      %s197 = ssub.s32 %s187, %s195
      %s198 = sor.u32 %s196, %s197
      %p199 = scmp.eq.s32.totalorder %s198, 0
      %s201 = sadd.s32 %s200, 1
      %s202 = scalar_select %p199, %s200, %s201
      %p205 = pneg %p199
      %p206 = scmp.eq.s32.totalorder %s27, 11
      %p207 = por %p205, %p206
      %p208 = scmp.ne.s32.totalorder %s200, %s203
      %p209 = scmp.eq.s32.totalorder %s27, 0
      %p210 = por %p208, %p209
      %p211 = scmp.ne.s32.totalorder %s200, %s203
      %p212 = scmp.eq.s32.totalorder %s32, 11
      %p213 = por %p211, %p212
      %p214 = scmp.ne.s32.totalorder %s203, %s204
      %p215 = scmp.eq.s32.totalorder %s32, 0
      %p216 = por %p214, %p215
      %p217 = scmp.ne.s32.totalorder %s203, %s204
      %p218 = scmp.eq.s32.totalorder %s33, 11
      %p219 = por %p217, %p218
      %p221 = scmp.ne.s32.totalorder %s204, %s220
      %p222 = scmp.eq.s32.totalorder %s33, 0
      %p223 = por %p221, %p222
      %p224 = scmp.le.s32.totalorder 1, %s27
      %p225 = scmp.lt.s32.totalorder %s27, 13
      %p226 = pnand %p224, %p225
      %p227 = pneg %p226
      // Predicated region
      $region9: #{tpu_custom_call.1} parent=5 // pred_check
        _
      $region10: #{tpu_custom_call.1} parent=5 // pred_check_branch
        %229 = sbr.rel (%p226) target = $region12
      $region11: #{tpu_custom_call.1} parent=5 // pred_region
        %s230 = ssub.s32 %s27, 1
        // Predicated region
        $region13: #{tpu_custom_call.1} parent=11 // pred_check
          %p231 = pneg %p60
        $region14: #{tpu_custom_call.1} parent=11 // pred_check_branch
          %233 = sbr.rel (%p231) target = $region16
        $region15: #{tpu_custom_call.1} parent=11 // pred_region
          _
        $region16: #{tpu_custom_call.1} parent=11 // pred_fallthru
          _
      $region12: #{tpu_custom_call.1} parent=5 // pred_fallthru
        _
      %p234 = scmp.lt.s32.totalorder %s27, 12
      // Predicated region
      $region17: #{tpu_custom_call.1} parent=5 // pred_check
        %p235 = pneg %p234
      $region18: #{tpu_custom_call.1} parent=5 // pred_check_branch
        %237 = sbr.rel (%p235) target = $region20
      $region19: #{tpu_custom_call.1} parent=5 // pred_region
        // Predicated region
        $region21: #{tpu_custom_call.1} parent=19 // pred_check
          %p238 = pneg %p82
        $region22: #{tpu_custom_call.1} parent=19 // pred_check_branch
          %240 = sbr.rel (%p238) target = $region24
        $region23: #{tpu_custom_call.1} parent=19 // pred_region
          %s241 = sld [smem:[#allocation4 + %s34]]
          %s242 = smul.u32 16, %s241
          %p243 = scmp.lt.s32.totalorder %s242, 47
          %s244 = scalar_select %p243, %s242, 47
          %s245 = smul.addr %s244, 4
          %s246 = scalar_lea.vmem %s3, %s245
          %s247 = sld [smem:[#allocation4 + %s34]]
          %s248 = smul.u32 16, %s247
        $region24: #{tpu_custom_call.1} parent=19 // pred_fallthru
          _
        // Predicated region
        $region25: #{tpu_custom_call.1} parent=19 // pred_check
          %p249 = pneg %p110
        $region26: #{tpu_custom_call.1} parent=19 // pred_check_branch
          %251 = sbr.rel (%p249) target = $region28
        $region27: #{tpu_custom_call.1} parent=19 // pred_region
          %s252 = sand.u32 %s100, 1
          %s253 = sand.u32 %s100, 1
          %s254 = smul.addr %s253, 16
          %s255 = scalar_lea.vmem [#allocation7], %s254
          %s256 = sld [smem:[#allocation5 + %s34]]
          %s257 = smul.addr %s256, 4
          %s258 = scalar_lea.vmem %s4, %s257
          // Predicated region
          $region29: #{tpu_custom_call.1} parent=27 // pred_check
            _
          $region30: #{tpu_custom_call.1} parent=27 // pred_check_branch
            %260 = sbr.rel (0) target = $region32
          $region31: #{tpu_custom_call.1} parent=27 // pred_region
            // Predicated region
            $region33: #{tpu_custom_call.1} parent=31 // pred_check
              _
            $region34: #{tpu_custom_call.1} parent=31 // pred_check_branch
              %262 = sbr.rel target = $region36
            $region35: #{tpu_custom_call.1} parent=31 // pred_region
              // Predicated region
              $region48: #{tpu_custom_call.1} parent=35 // pred_check
                _
              $region49: #{tpu_custom_call.1} parent=35 // pred_check_branch
                %283 = sbr.rel (0) target = $region51
              $region50: #{tpu_custom_call.1} parent=35 // pred_region
                loop: start=0, step=1, limit=1
                $region52: #{tpu_custom_call.1} parent=50 // loop_pre_header
                  _
                $region53: #{tpu_custom_call.1} parent=50 // loop_header
                  %s285 = sphi 0, %s289
                  %p286 = scmp.ge.s32.totalorder %s285, 1
                  %s290 = sphi %s258, %s258
                  %s291 = sphi %s255, %s255
                $region54: #{tpu_custom_call.1} parent=50 // loop_header_branch
                  %288 = sbr.rel (%p286) target = $region58
                $region55: #{tpu_custom_call.1} parent=50 // loop_body
                  _
                $region56: #{tpu_custom_call.1} parent=50 // loop_footer
                  %s289 = sadd.s32 1, %s285
                $region57: #{tpu_custom_call.1} parent=50 // loop_footer_branch
                  %284 = sbr.rel target = $region53
                $region58: #{tpu_custom_call.1} parent=50 // loop_exit
                  _
                loop: start=0, step=1, limit=1
                $region59: #{tpu_custom_call.1} parent=50 // loop_pre_header
                  _
                $region60: #{tpu_custom_call.1} parent=50 // loop_header
                  %s294 = sphi 0, %s298
                  %p295 = scmp.ge.s32.totalorder %s294, 1
                  %s299 = sphi %s258, %s258
                  %s300 = sphi %s255, %s255
                $region61: #{tpu_custom_call.1} parent=50 // loop_header_branch
                  %297 = sbr.rel (%p295) target = $region65
                $region62: #{tpu_custom_call.1} parent=50 // loop_body
                  %v301 = vld [vmem:[%s299] sm:$0xf]
                  %302 = vst [vmem:[%s300] sm:$0xf] %v301
                  %v303 = vld [vmem:[%s299 + $0xc] sm:$0xf]
                  %304 = vst [vmem:[%s300 + $0x4] sm:$0xf] %v303
                  %v305 = vld [vmem:[%s299 + $0x18] sm:$0xf]
                  %306 = vst [vmem:[%s300 + $0x8] sm:$0xf] %v305
                  %v307 = vld [vmem:[%s299 + $0x24] sm:$0xf]
                  %308 = vst [vmem:[%s300 + $0xc] sm:$0xf] %v307
                $region63: #{tpu_custom_call.1} parent=50 // loop_footer
                  %s298 = sadd.s32 1, %s294
                $region64: #{tpu_custom_call.1} parent=50 // loop_footer_branch
                  %293 = sbr.rel target = $region60
                $region65: #{tpu_custom_call.1} parent=50 // loop_exit
                  _
              $region51: #{tpu_custom_call.1} parent=35 // pred_fallthru
                _
            $region36: #{tpu_custom_call.1} parent=31 // pred_fallthru
              _
            // Predicated region
            $region37: #{tpu_custom_call.1} parent=31 // pred_check
              _
            $region38: #{tpu_custom_call.1} parent=31 // pred_check_branch
              %264 = sbr.rel (0) target = $region40
            $region39: #{tpu_custom_call.1} parent=31 // pred_region
              loop: start=0, step=1, limit=1
              $region41: #{tpu_custom_call.1} parent=39 // loop_pre_header
                _
              $region42: #{tpu_custom_call.1} parent=39 // loop_header
                %s267 = sphi 0, %s271
                %p268 = scmp.ge.s32.totalorder %s267, 1
                %s272 = sphi %s258, %s258
                %s273 = sphi %s255, %s255
              $region43: #{tpu_custom_call.1} parent=39 // loop_header_branch
                %270 = sbr.rel (%p268) target = $region47
              $region44: #{tpu_custom_call.1} parent=39 // loop_body
                %v274 = vld [vmem:[%s272] sm:$0xf]
                %275 = vst [vmem:[%s273] sm:$0xf] %v274
                %v276 = vld [vmem:[%s272 + $0xc] sm:$0xf]
                %277 = vst [vmem:[%s273 + $0x4] sm:$0xf] %v276
                %v278 = vld [vmem:[%s272 + $0x18] sm:$0xf]
                %279 = vst [vmem:[%s273 + $0x8] sm:$0xf] %v278
                %v280 = vld [vmem:[%s272 + $0x24] sm:$0xf]
                %281 = vst [vmem:[%s273 + $0xc] sm:$0xf] %v280
              $region45: #{tpu_custom_call.1} parent=39 // loop_footer
                %s271 = sadd.s32 1, %s267
              $region46: #{tpu_custom_call.1} parent=39 // loop_footer_branch
                %266 = sbr.rel target = $region42
              $region47: #{tpu_custom_call.1} parent=39 // loop_exit
                _
            $region40: #{tpu_custom_call.1} parent=31 // pred_fallthru
              _
          $region32: #{tpu_custom_call.1} parent=27 // pred_fallthru
            _
          %309 = vnop
        $region28: #{tpu_custom_call.1} parent=19 // pred_fallthru
          _
        // Predicated region
        $region66: #{tpu_custom_call.1} parent=19 // pred_check
          %p310 = pneg %p138
        $region67: #{tpu_custom_call.1} parent=19 // pred_check_branch
          %312 = sbr.rel (%p310) target = $region69
        $region68: #{tpu_custom_call.1} parent=19 // pred_region
          %s313 = sld [smem:[#allocation4 + %s34]]
          %s314 = smul.u32 16, %s313
          %p315 = scmp.lt.s32.totalorder %s314, 47
          %s316 = scalar_select %p315, %s314, 47
          %s317 = smul.addr %s316, 8
          %s318 = scalar_lea.vmem %s5, %s317
          %s319 = sld [smem:[#allocation4 + %s34]]
          %s320 = smul.u32 16, %s319
        $region69: #{tpu_custom_call.1} parent=19 // pred_fallthru
          _
        // Predicated region
        $region70: #{tpu_custom_call.1} parent=19 // pred_check
          %p321 = pneg %p166
        $region71: #{tpu_custom_call.1} parent=19 // pred_check_branch
          %323 = sbr.rel (%p321) target = $region73
        $region72: #{tpu_custom_call.1} parent=19 // pred_region
          %s324 = sld [smem:[#allocation5 + %s34]]
          %p325 = scmp.lt.s32.totalorder %s324, 2
          %s326 = scalar_select %p325, %s324, 2
          %s327 = scalar_lea.vmem %s6, %s326
          %s328 = sld [smem:[#allocation5 + %s34]]
        $region73: #{tpu_custom_call.1} parent=19 // pred_fallthru
          _
      $region20: #{tpu_custom_call.1} parent=5 // pred_fallthru
        _
      %p329 = scmp.le.s32.totalorder 1, %s27
      %p330 = scmp.lt.s32.totalorder %s27, 13
      %p331 = pnand %p329, %p330
      %p332 = pneg %p331
      // Predicated region
      $region74: #{tpu_custom_call.1} parent=5 // pred_check
        _
      $region75: #{tpu_custom_call.1} parent=5 // pred_check_branch
        %334 = sbr.rel (%p331) target = $region77
      $region76: #{tpu_custom_call.1} parent=5 // pred_region
        %s335 = ssub.s32 %s27, 1
        %s336 = sand.u32 %s103, 1
        %s337 = sand.u32 %s103, 1
        %s338 = smul.addr %s337, 16
        %s339 = scalar_lea.vmem [#allocation7], %s338
        // Predicated region
        $region78: #{tpu_custom_call.1} parent=76 // pred_check
          %p340 = pneg %p116
        $region79: #{tpu_custom_call.1} parent=76 // pred_check_branch
          %342 = sbr.rel (%p340) target = $region81
        $region80: #{tpu_custom_call.1} parent=76 // pred_region
          _
        $region81: #{tpu_custom_call.1} parent=76 // pred_fallthru
          _
        %p343 = pneg %p60
        %p344 = pneg %p57
        %s345 = sld [smem:[#allocation4 + %s36]]
        %s346 = smul.u32 16, %s345
        %p347 = scmp.lt.s32.totalorder %s346, 47
        %s348 = scalar_select %p347, %s346, 47
        %s349 = smul.addr %s348, 4
        %s350 = scalar_lea.vmem %s3, %s349
        %p351 = pneg %p88
        %p352 = pneg %p85
        %s353 = sand.u32 %s103, 1
        %s354 = sand.u32 %s103, 1
        %s355 = smul.addr %s354, 16
        %s356 = scalar_lea.vmem [#allocation7], %s355
        %p357 = pneg %p116
        %p358 = pneg %p113
        %s359 = sld [smem:[#allocation4 + %s36]]
        %s360 = smul.u32 16, %s359
        %p361 = scmp.lt.s32.totalorder %s360, 47
        %s362 = scalar_select %p361, %s360, 47
        %s363 = smul.addr %s362, 8
        %s364 = scalar_lea.vmem %s5, %s363
        %p365 = pneg %p144
        %p366 = pneg %p141
        %s367 = sld [smem:[#allocation5 + %s36]]
        %p368 = scmp.lt.s32.totalorder %s367, 2
        %s369 = scalar_select %p368, %s367, 2
        %s370 = scalar_lea.vmem %s6, %s369
        %p371 = pneg %p172
        %p372 = pneg %p169
        %p373 = pneg %p216
        %p374 = pneg %p213
        %s375 = sand.u32 %s203, 1
        %s376 = scalar_lea.sflag [#allocation9], %s375
        %s377 = sand.u32 %s203, 1
        %s378 = smul.addr %s377, 128
        %s379 = scalar_lea.vmem [#allocation8], %s378
        %s380 = sld [smem:[#allocation4 + %s36]]
        %s381 = smul.u32 16, %s380
        %p382 = scmp.lt.s32.totalorder %s381, 47
        %s383 = scalar_select %p382, %s381, 47
        %s384 = smul.addr %s383, 4
        %s385 = scalar_lea.vmem %s3, %s384
        %s386 = sld [smem:[#allocation4 + %s36]]
        %s387 = smul.u32 16, %s386
        %s388 = sld [smem:[#allocation5 + %s36]]
        %s389 = sld [smem:[#allocation4 + %s36]]
        %s390 = smul.u32 16, %s389
        %p391 = scmp.lt.s32.totalorder %s390, 47
        %s392 = scalar_select %p391, %s390, 47
        %s393 = smul.addr %s392, 8
        %s394 = scalar_lea.vmem %s5, %s393
        %s395 = sld [smem:[#allocation4 + %s36]]
        %s396 = smul.u32 16, %s395
        %s397 = sld [smem:[#allocation5 + %s36]]
        %p398 = scmp.lt.s32.totalorder %s397, 2
        %s399 = scalar_select %p398, %s397, 2
        %s400 = scalar_lea.vmem %s6, %s399
        %s401 = sld [smem:[#allocation5 + %s36]]
        %s402 = sld [smem:[#allocation4 + %s36]]
        %s403 = sld [smem:[#allocation5 + %s36]]
        %s404 = ssub.s32 %s403, %s402
        %s405 = smul.u32 %s37, %s404
        %s406 = sadd.s32 %s402, %s405
        %s407 = ssub.s32 %s402, %s403
        %s408 = smul.u32 %s37, %s407
        %s409 = sadd.s32 %s403, %s408
        %s410 = smul.u32 16, %s406
        %p412 = scmp.eq.s32.totalorder %s37, 0
        // Predicated region
        $region82: #{tpu_custom_call.1} parent=76 // pred_check
          %p413 = pneg %p412
        $region83: #{tpu_custom_call.1} parent=76 // pred_check_branch
          %415 = sbr.rel (%p413) target = $region85
        $region84: #{tpu_custom_call.1} parent=76 // pred_region
          %v416 = vld [vmem:[%s385] sm:$0xf]
          %v417 = vld [vmem:[%s385 + $0x4] sm:$0xf]
          %v418 = vld [vmem:[%s385 + $0x8] sm:$0xf]
          %v419 = vld [vmem:[%s385 + $0xc] sm:$0xf]
          %v420 = vld [vmem:[%s385 + $0x10] sm:$0xf]
          %v421 = vld [vmem:[%s385 + $0x14] sm:$0xf]
          %v422 = vld [vmem:[%s385 + $0x18] sm:$0xf]
          %v423 = vld [vmem:[%s385 + $0x1c] sm:$0xf]
          %v424 = vld [vmem:[%s385 + $0x20] sm:$0xf]
          %v425 = vld [vmem:[%s385 + $0x24] sm:$0xf]
          %v426 = vld [vmem:[%s385 + $0x28] sm:$0xf]
          %v427 = vld [vmem:[%s385 + $0x2c] sm:$0xf]
          %v428 = vld [vmem:[%s385 + $0x30] sm:$0xf]
          %v429 = vld [vmem:[%s385 + $0x34] sm:$0xf]
          %v430 = vld [vmem:[%s385 + $0x38] sm:$0xf]
          %v431 = vld [vmem:[%s385 + $0x3c] sm:$0xf]
          %v432 = vld [vmem:[%s339] sm:$0xf]
          %v433 = vld [vmem:[%s339 + $0x4] sm:$0xf]
          %v434 = vld [vmem:[%s339 + $0x8] sm:$0xf]
          %v435 = vld [vmem:[%s339 + $0xc] sm:$0xf]
          %v452 = vunpack.c.l.b16 %v416
          %v453 = vunpack.c.l.b16 %v417
          %v454 = vunpack.c.l.b16 %v418
          %v455 = vunpack.c.l.b16 %v419
          %v456 = vunpack.c.l.b16 %v420
          %v457 = vunpack.c.l.b16 %v421
          %v458 = vunpack.c.l.b16 %v422
          %v459 = vunpack.c.l.b16 %v423
          %v460 = vunpack.c.l.b16 %v424
          %v461 = vunpack.c.l.b16 %v425
          %v462 = vunpack.c.l.b16 %v426
          %v463 = vunpack.c.l.b16 %v427
          %v464 = vunpack.c.l.b16 %v428
          %v465 = vunpack.c.l.b16 %v429
          %v466 = vunpack.c.l.b16 %v430
          %v467 = vunpack.c.l.b16 %v431
          %v468 = vpack.c.b16 %v453, %v452
          %v469 = vpack.c.b16 %v455, %v454
          %v470 = vpack.c.b16 %v457, %v456
          %v471 = vpack.c.b16 %v459, %v458
          %v472 = vpack.c.b16 %v461, %v460
          %v473 = vpack.c.b16 %v463, %v462
          %v474 = vpack.c.b16 %v465, %v464
          %v475 = vpack.c.b16 %v467, %v466
          %v480 = vunpack.c.l.b16 %v432
          %v481 = vunpack.c.l.b16 %v433
          %v482 = vunpack.c.l.b16 %v434
          %v483 = vunpack.c.l.b16 %v435
          %v484 = vpack.c.b16 %v481, %v480
          %v485 = vpack.c.b16 %v483, %v482
          %vm488 = vcmask 261120
          %v490 = vsel %vm488, %v468, 0
          %v493 = vsel %vm488, %v469, 0
          %v496 = vsel %vm488, %v470, 0
          %v499 = vsel %vm488, %v471, 0
          %v502 = vsel %vm488, %v472, 0
          %v505 = vsel %vm488, %v473, 0
          %v508 = vsel %vm488, %v474, 0
          %v511 = vsel %vm488, %v475, 0
          %513 = vmatprep.subr.bf16.mxu0 0
          %514 = vmatpush1.bf16.msra.mxu0 %v484
          %515 = vmatprep.subr.bf16.mxu0 0
          %516 = vmatpush1.bf16.msra.mxu0 %v485
          %517 = vmatprep.subr.bf16.mxu0 0
          %518 = vmatpush1.bf16.msra.mxu0 0
          %519 = vmatprep.subr.bf16.mxu0 0
          %520 = vmatpush1.bf16.msra.mxu0 0
          %521 = vmatprep.subr.bf16.mxu0 0
          %522 = vmatpush1.bf16.msra.mxu0 0
          %523 = vmatprep.subr.bf16.mxu0 0
          %524 = vmatpush1.bf16.msra.mxu0 0
          %525 = vmatprep.subr.bf16.mxu0 0
          %526 = vmatpush1.bf16.msra.mxu0 0
          %527 = vmatprep.subr.bf16.mxu0 0
          %528 = vmatpush1.bf16.msra.mxu0 0
          %529 = vmatprep.subr.bf16.mxu0 0
          %530 = vmatpush1.bf16.msra.mxu0 0
          %531 = vmatprep.subr.bf16.mxu0 0
          %532 = vmatpush1.bf16.msra.mxu0 0
          %533 = vmatprep.subr.bf16.mxu0 0
          %534 = vmatpush1.bf16.msra.mxu0 0
          %535 = vmatprep.subr.bf16.mxu0 0
          %536 = vmatpush1.bf16.msra.mxu0 0
          %537 = vmatprep.subr.bf16.mxu0 0
          %538 = vmatpush1.bf16.msra.mxu0 0
          %539 = vmatprep.subr.bf16.mxu0 0
          %540 = vmatpush1.bf16.msra.mxu0 0
          %541 = vmatprep.subr.bf16.mxu0 0
          %542 = vmatpush1.bf16.msra.mxu0 0
          %543 = vmatprep.subr.bf16.mxu0 0
          %544 = vmatpush1.bf16.msra.mxu0 0
          %545 = vmatprep.mubr.bf16.mxu0 0
          %546 = vmatmul.mubr.bf16.gmra.mrb[0].mxu0 %v490
          %v547 = vpop.f32.mrb[0].mxu0
          %v548 = vadd.f32 0.0, %v547
          %v549 = vpop.f32.mrb[0].mxu0
          %v550 = vpop.f32.mrb[0].mxu0
          %v551 = vadd.f32 0.0, %v550
          %v552 = vpop.f32.mrb[0].mxu0
          %553 = vmatprep.mubr.bf16.mxu0 0
          %554 = vmatmul.mubr.bf16.gmra.mrb[0].mxu0 %v493
          %v555 = vpop.f32.mrb[0].mxu0
          %v556 = vadd.f32 0.0, %v555
          %v557 = vpop.f32.mrb[0].mxu0
          %v558 = vpop.f32.mrb[0].mxu0
          %v559 = vadd.f32 0.0, %v558
          %v560 = vpop.f32.mrb[0].mxu0
          %561 = vmatprep.mubr.bf16.mxu0 0
          %562 = vmatmul.mubr.bf16.gmra.mrb[0].mxu0 %v496
          %v563 = vpop.f32.mrb[0].mxu0
          %v564 = vadd.f32 0.0, %v563
          %v565 = vpop.f32.mrb[0].mxu0
          %v566 = vpop.f32.mrb[0].mxu0
          %v567 = vadd.f32 0.0, %v566
          %v568 = vpop.f32.mrb[0].mxu0
          %569 = vmatprep.mubr.bf16.mxu0 0
          %570 = vmatmul.mubr.bf16.gmra.mrb[0].mxu0 %v499
          %v571 = vpop.f32.mrb[0].mxu0
          %v572 = vadd.f32 0.0, %v571
          %v573 = vpop.f32.mrb[0].mxu0
          %v574 = vpop.f32.mrb[0].mxu0
          %v575 = vadd.f32 0.0, %v574
          %v576 = vpop.f32.mrb[0].mxu0
          %577 = vmatprep.mubr.bf16.mxu0 0
          %578 = vmatmul.mubr.bf16.gmra.mrb[0].mxu0 %v502
          %v579 = vpop.f32.mrb[0].mxu0
          %v580 = vadd.f32 0.0, %v579
          %v581 = vpop.f32.mrb[0].mxu0
          %v582 = vpop.f32.mrb[0].mxu0
          %v583 = vadd.f32 0.0, %v582
          %v584 = vpop.f32.mrb[0].mxu0
          %585 = vmatprep.mubr.bf16.mxu0 0
          %586 = vmatmul.mubr.bf16.gmra.mrb[0].mxu0 %v505
          %v587 = vpop.f32.mrb[0].mxu0
          %v588 = vadd.f32 0.0, %v587
          %v589 = vpop.f32.mrb[0].mxu0
          %v590 = vpop.f32.mrb[0].mxu0
          %v591 = vadd.f32 0.0, %v590
          %v592 = vpop.f32.mrb[0].mxu0
          %593 = vmatprep.mubr.bf16.mxu0 0
          %594 = vmatmul.mubr.bf16.gmra.mrb[0].mxu0 %v508
          %v595 = vpop.f32.mrb[0].mxu0
          %v596 = vadd.f32 0.0, %v595
          %v597 = vpop.f32.mrb[0].mxu0
          %v598 = vpop.f32.mrb[0].mxu0
          %v599 = vadd.f32 0.0, %v598
          %v600 = vpop.f32.mrb[0].mxu0
          %601 = vmatprep.mubr.bf16.mxu0 0
          %602 = vmatmul.mubr.bf16.gmra.mrb[0].mxu0 %v511
          %v603 = vpop.f32.mrb[0].mxu0
          %v604 = vadd.f32 0.0, %v603
          %v605 = vpop.f32.mrb[0].mxu0
          %v606 = vpop.f32.mrb[0].mxu0
          %v607 = vadd.f32 0.0, %v606
          %v608 = vpop.f32.mrb[0].mxu0
          %609 = vdwg.mxu0
          %v610 = vld [vmem:[%s394] sm:$0xff]
          %v611 = vld [vmem:[%s394 + $0x8] sm:$0xff]
          %v612 = vld [vmem:[%s394 + $0x10] sm:$0xff]
          %v613 = vld [vmem:[%s394 + $0x18] sm:$0xff]
          %v614 = vld [vmem:[%s394 + $0x20] sm:$0xff]
          %v615 = vld [vmem:[%s394 + $0x28] sm:$0xff]
          %v616 = vld [vmem:[%s394 + $0x30] sm:$0xff]
          %v617 = vld [vmem:[%s394 + $0x38] sm:$0xff]
          %v618 = vld [vmem:[%s394 + $0x40] sm:$0xff]
          %v619 = vld [vmem:[%s394 + $0x48] sm:$0xff]
          %v620 = vld [vmem:[%s394 + $0x50] sm:$0xff]
          %v621 = vld [vmem:[%s394 + $0x58] sm:$0xff]
          %v622 = vld [vmem:[%s394 + $0x60] sm:$0xff]
          %v623 = vld [vmem:[%s394 + $0x68] sm:$0xff]
          %v624 = vld [vmem:[%s394 + $0x70] sm:$0xff]
          %v625 = vld [vmem:[%s394 + $0x78] sm:$0xff]
          %v626 = vld [vmem:[%s400] sm:$0x1]
          %628 = vset.pattern.permute.xlu0 0
          %629 = vperm.xlu0 %628, %v610
          %v630 = vpop.permute.xlu0 %629
          %633 = vset.pattern.permute.xlu0 0
          %634 = vperm.xlu0 %633, %v611
          %v635 = vpop.permute.xlu0 %634
          %638 = vset.pattern.permute.xlu0 0
          %639 = vperm.xlu0 %638, %v612
          %v640 = vpop.permute.xlu0 %639
          %643 = vset.pattern.permute.xlu0 0
          %644 = vperm.xlu0 %643, %v613
          %v645 = vpop.permute.xlu0 %644
          %648 = vset.pattern.permute.xlu0 0
          %649 = vperm.xlu0 %648, %v614
          %v650 = vpop.permute.xlu0 %649
          %653 = vset.pattern.permute.xlu0 0
          %654 = vperm.xlu0 %653, %v615
          %v655 = vpop.permute.xlu0 %654
          %658 = vset.pattern.permute.xlu0 0
          %659 = vperm.xlu0 %658, %v616
          %v660 = vpop.permute.xlu0 %659
          %663 = vset.pattern.permute.xlu0 0
          %664 = vperm.xlu0 %663, %v617
          %v665 = vpop.permute.xlu0 %664
          %668 = vset.pattern.permute.xlu0 0
          %669 = vperm.xlu0 %668, %v618
          %v670 = vpop.permute.xlu0 %669
          %673 = vset.pattern.permute.xlu0 0
          %674 = vperm.xlu0 %673, %v619
          %v675 = vpop.permute.xlu0 %674
          %678 = vset.pattern.permute.xlu0 0
          %679 = vperm.xlu0 %678, %v620
          %v680 = vpop.permute.xlu0 %679
          %683 = vset.pattern.permute.xlu0 0
          %684 = vperm.xlu0 %683, %v621
          %v685 = vpop.permute.xlu0 %684
          %688 = vset.pattern.permute.xlu0 0
          %689 = vperm.xlu0 %688, %v622
          %v690 = vpop.permute.xlu0 %689
          %693 = vset.pattern.permute.xlu0 0
          %694 = vperm.xlu0 %693, %v623
          %v695 = vpop.permute.xlu0 %694
          %698 = vset.pattern.permute.xlu0 0
          %699 = vperm.xlu0 %698, %v624
          %v700 = vpop.permute.xlu0 %699
          %703 = vset.pattern.permute.xlu0 0
          %704 = vperm.xlu0 %703, %v625
          %v705 = vpop.permute.xlu0 %704
          %v708 = vlaneseq
          %v709 = vshrl.u32 %v708, 7
          %v710 = vsub.s32 0, %v709
          %v711 = vrot.slane %v626, %v710
          %v713 = vadd.f32 %v630, %v711
          %v714 = vadd.f32 %v635, %v711
          %v715 = vadd.f32 %v640, %v711
          %v716 = vadd.f32 %v645, %v711
          %v717 = vadd.f32 %v650, %v711
          %v718 = vadd.f32 %v655, %v711
          %v719 = vadd.f32 %v660, %v711
          %v720 = vadd.f32 %v665, %v711
          %v721 = vadd.f32 %v670, %v711
          %v722 = vadd.f32 %v675, %v711
          %v723 = vadd.f32 %v680, %v711
          %v724 = vadd.f32 %v685, %v711
          %v725 = vadd.f32 %v690, %v711
          %v726 = vadd.f32 %v695, %v711
          %v727 = vadd.f32 %v700, %v711
          %v728 = vadd.f32 %v705, %v711
          %v729 = vmul.f32 %v548, 2.0
          %v730 = vmul.f32 %v551, 2.0
          %v731 = vmul.f32 %v556, 2.0
          %v732 = vmul.f32 %v559, 2.0
          %v733 = vmul.f32 %v564, 2.0
          %v734 = vmul.f32 %v567, 2.0
          %v735 = vmul.f32 %v572, 2.0
          %v736 = vmul.f32 %v575, 2.0
          %v737 = vmul.f32 %v580, 2.0
          %v738 = vmul.f32 %v583, 2.0
          %v739 = vmul.f32 %v588, 2.0
          %v740 = vmul.f32 %v591, 2.0
          %v741 = vmul.f32 %v596, 2.0
          %v742 = vmul.f32 %v599, 2.0
          %v743 = vmul.f32 %v604, 2.0
          %v744 = vmul.f32 %v607, 2.0
          %v745 = vsub.f32 %v713, %v729
          %v746 = vsub.f32 %v714, %v730
          %v747 = vsub.f32 %v715, %v731
          %v748 = vsub.f32 %v716, %v732
          %v749 = vsub.f32 %v717, %v733
          %v750 = vsub.f32 %v718, %v734
          %v751 = vsub.f32 %v719, %v735
          %v752 = vsub.f32 %v720, %v736
          %v753 = vsub.f32 %v721, %v737
          %v754 = vsub.f32 %v722, %v738
          %v755 = vsub.f32 %v723, %v739
          %v756 = vsub.f32 %v724, %v740
          %v757 = vsub.f32 %v725, %v741
          %v758 = vsub.f32 %v726, %v742
          %v759 = vsub.f32 %v727, %v743
          %v760 = vsub.f32 %v728, %v744
          %v761 = vmax.f32 %v745, 0.0
          %v762 = vmax.f32 %v746, 0.0
          %v763 = vmax.f32 %v747, 0.0
          %v764 = vmax.f32 %v748, 0.0
          %v765 = vmax.f32 %v749, 0.0
          %v766 = vmax.f32 %v750, 0.0
          %v767 = vmax.f32 %v751, 0.0
          %v768 = vmax.f32 %v752, 0.0
          %v769 = vmax.f32 %v753, 0.0
          %v770 = vmax.f32 %v754, 0.0
          %v771 = vmax.f32 %v755, 0.0
          %v772 = vmax.f32 %v756, 0.0
          %v773 = vmax.f32 %v757, 0.0
          %v774 = vmax.f32 %v758, 0.0
          %v775 = vmax.f32 %v759, 0.0
          %v776 = vmax.f32 %v760, 0.0
          %s777 = sld [smem:[#allocation4 + %s36]]
          %s778 = sld [smem:[#allocation5 + %s36]]
          %p779 = scmp.eq.s32.totalorder %s777, %s778
          %v780 = vlaneseq
          %v781 = vshrl.u32 %v780, 7
          %v782 = vadd.s32 %v781, 8
          %v783 = vadd.s32 %v781, 16
          %v784 = vadd.s32 %v781, 24
          %v785 = vadd.s32 %v781, 32
          %v786 = vadd.s32 %v781, 40
          %v787 = vadd.s32 %v781, 48
          %v788 = vadd.s32 %v781, 56
          %v789 = vadd.s32 %v781, 64
          %v790 = vadd.s32 %v781, 72
          %v791 = vadd.s32 %v781, 80
          %v792 = vadd.s32 %v781, 88
          %v793 = vadd.s32 %v781, 96
          %v794 = vadd.s32 %v781, 104
          %v795 = vadd.s32 %v781, 112
          %v796 = vadd.s32 %v781, 120
          %v797 = vlaneseq
          %v798 = vand.u32 %v797, 127
          %vm799 = vcmp.eq.s32.totalorder %v781, %v798
          %vm800 = vcmp.eq.s32.totalorder %v782, %v798
          %vm801 = vcmp.eq.s32.totalorder %v783, %v798
          %vm802 = vcmp.eq.s32.totalorder %v784, %v798
          %vm803 = vcmp.eq.s32.totalorder %v785, %v798
          %vm804 = vcmp.eq.s32.totalorder %v786, %v798
          %vm805 = vcmp.eq.s32.totalorder %v787, %v798
          %vm806 = vcmp.eq.s32.totalorder %v788, %v798
          %vm807 = vcmp.eq.s32.totalorder %v789, %v798
          %vm808 = vcmp.eq.s32.totalorder %v790, %v798
          %vm809 = vcmp.eq.s32.totalorder %v791, %v798
          %vm810 = vcmp.eq.s32.totalorder %v792, %v798
          %vm811 = vcmp.eq.s32.totalorder %v793, %v798
          %vm812 = vcmp.eq.s32.totalorder %v794, %v798
          %vm813 = vcmp.eq.s32.totalorder %v795, %v798
          %vm814 = vcmp.eq.s32.totalorder %v796, %v798
          %s815 = scalar_select %p779, 1, 0
          %v816 = vstv %s815
          %vm817 = vcmp.eq.s32.totalorder %v816, 1
          %vm818 = vmand %vm817, %vm799
          %vm819 = vmand %vm817, %vm800
          %vm820 = vmand %vm817, %vm801
          %vm821 = vmand %vm817, %vm802
          %vm822 = vmand %vm817, %vm803
          %vm823 = vmand %vm817, %vm804
          %vm824 = vmand %vm817, %vm805
          %vm825 = vmand %vm817, %vm806
          %vm826 = vmand %vm817, %vm807
          %vm827 = vmand %vm817, %vm808
          %vm828 = vmand %vm817, %vm809
          %vm829 = vmand %vm817, %vm810
          %vm830 = vmand %vm817, %vm811
          %vm831 = vmand %vm817, %vm812
          %vm832 = vmand %vm817, %vm813
          %vm833 = vmand %vm817, %vm814
          %v834 = vsel %vm818, 0.0, %v761
          %v835 = vsel %vm819, 0.0, %v762
          %v836 = vsel %vm820, 0.0, %v763
          %v837 = vsel %vm821, 0.0, %v764
          %v838 = vsel %vm822, 0.0, %v765
          %v839 = vsel %vm823, 0.0, %v766
          %v840 = vsel %vm824, 0.0, %v767
          %v841 = vsel %vm825, 0.0, %v768
          %v842 = vsel %vm826, 0.0, %v769
          %v843 = vsel %vm827, 0.0, %v770
          %v844 = vsel %vm828, 0.0, %v771
          %v845 = vsel %vm829, 0.0, %v772
          %v846 = vsel %vm830, 0.0, %v773
          %v847 = vsel %vm831, 0.0, %v774
          %v848 = vsel %vm832, 0.0, %v775
          %v849 = vsel %vm833, 0.0, %v776
          %s850 = sld [smem:[#allocation6]]
          %v851 = vstv %s850
          %v852 = vmul.f32 %v834, %v851
          %v853 = vmul.f32 %v835, %v851
          %v854 = vmul.f32 %v836, %v851
          %v855 = vmul.f32 %v837, %v851
          %v856 = vmul.f32 %v838, %v851
          %v857 = vmul.f32 %v839, %v851
          %v858 = vmul.f32 %v840, %v851
          %v859 = vmul.f32 %v841, %v851
          %v860 = vmul.f32 %v842, %v851
          %v861 = vmul.f32 %v843, %v851
          %v862 = vmul.f32 %v844, %v851
          %v863 = vmul.f32 %v845, %v851
          %v864 = vmul.f32 %v846, %v851
          %v865 = vmul.f32 %v847, %v851
          %v866 = vmul.f32 %v848, %v851
          %v867 = vmul.f32 %v849, %v851
          %v868 = vmul.f32 %v852, 1.442695
          %v869 = vpow.pop %v868
          %v870 = vmul.f32 %v853, 1.442695
          %v871 = vpow.pop %v870
          %v872 = vmul.f32 %v854, 1.442695
          %v873 = vpow.pop %v872
          %v874 = vmul.f32 %v855, 1.442695
          %v875 = vpow.pop %v874
          %v876 = vmul.f32 %v856, 1.442695
          %v877 = vpow.pop %v876
          %v878 = vmul.f32 %v857, 1.442695
          %v879 = vpow.pop %v878
          %v880 = vmul.f32 %v858, 1.442695
          %v881 = vpow.pop %v880
          %v882 = vmul.f32 %v859, 1.442695
          %v883 = vpow.pop %v882
          %v884 = vmul.f32 %v860, 1.442695
          %v885 = vpow.pop %v884
          %v886 = vmul.f32 %v861, 1.442695
          %v887 = vpow.pop %v886
          %v888 = vmul.f32 %v862, 1.442695
          %v889 = vpow.pop %v888
          %v890 = vmul.f32 %v863, 1.442695
          %v891 = vpow.pop %v890
          %v892 = vmul.f32 %v864, 1.442695
          %v893 = vpow.pop %v892
          %v894 = vmul.f32 %v865, 1.442695
          %v895 = vpow.pop %v894
          %v896 = vmul.f32 %v866, 1.442695
          %v897 = vpow.pop %v896
          %v898 = vmul.f32 %v867, 1.442695
          %v899 = vpow.pop %v898
          %v900 = vmul.f32 %v869, %v869
          %v901 = vmul.f32 %v871, %v871
          %v902 = vmul.f32 %v873, %v873
          %v903 = vmul.f32 %v875, %v875
          %v904 = vmul.f32 %v877, %v877
          %v905 = vmul.f32 %v879, %v879
          %v906 = vmul.f32 %v881, %v881
          %v907 = vmul.f32 %v883, %v883
          %v908 = vmul.f32 %v885, %v885
          %v909 = vmul.f32 %v887, %v887
          %v910 = vmul.f32 %v889, %v889
          %v911 = vmul.f32 %v891, %v891
          %v912 = vmul.f32 %v893, %v893
          %v913 = vmul.f32 %v895, %v895
          %v914 = vmul.f32 %v897, %v897
          %v915 = vmul.f32 %v899, %v899
          %v916 = vadd.f32 %v869, %v900
          %v917 = vadd.f32 %v871, %v901
          %v918 = vadd.f32 %v873, %v902
          %v919 = vadd.f32 %v875, %v903
          %v920 = vadd.f32 %v877, %v904
          %v921 = vadd.f32 %v879, %v905
          %v922 = vadd.f32 %v881, %v906
          %v923 = vadd.f32 %v883, %v907
          %v924 = vadd.f32 %v885, %v908
          %v925 = vadd.f32 %v887, %v909
          %v926 = vadd.f32 %v889, %v910
          %v927 = vadd.f32 %v891, %v911
          %v928 = vadd.f32 %v893, %v912
          %v929 = vadd.f32 %v895, %v913
          %v930 = vadd.f32 %v897, %v914
          %v931 = vadd.f32 %v899, %v915
          %v932 = vmul.f32 %v900, %v900
          %v933 = vmul.f32 %v901, %v901
          %v934 = vmul.f32 %v902, %v902
          %v935 = vmul.f32 %v903, %v903
          %v936 = vmul.f32 %v904, %v904
          %v937 = vmul.f32 %v905, %v905
          %v938 = vmul.f32 %v906, %v906
          %v939 = vmul.f32 %v907, %v907
          %v940 = vmul.f32 %v908, %v908
          %v941 = vmul.f32 %v909, %v909
          %v942 = vmul.f32 %v910, %v910
          %v943 = vmul.f32 %v911, %v911
          %v944 = vmul.f32 %v912, %v912
          %v945 = vmul.f32 %v913, %v913
          %v946 = vmul.f32 %v914, %v914
          %v947 = vmul.f32 %v915, %v915
          %v948 = vadd.f32 %v916, %v932
          %v949 = vadd.f32 %v917, %v933
          %v950 = vadd.f32 %v918, %v934
          %v951 = vadd.f32 %v919, %v935
          %v952 = vadd.f32 %v920, %v936
          %v953 = vadd.f32 %v921, %v937
          %v954 = vadd.f32 %v922, %v938
          %v955 = vadd.f32 %v923, %v939
          %v956 = vadd.f32 %v924, %v940
          %v957 = vadd.f32 %v925, %v941
          %v958 = vadd.f32 %v926, %v942
          %v959 = vadd.f32 %v927, %v943
          %v960 = vadd.f32 %v928, %v944
          %v961 = vadd.f32 %v929, %v945
          %v962 = vadd.f32 %v930, %v946
          %v963 = vadd.f32 %v931, %v947
          %v964 = vmul.f32 %v932, %v932
          %v965 = vmul.f32 %v933, %v933
          %v966 = vmul.f32 %v934, %v934
          %v967 = vmul.f32 %v935, %v935
          %v968 = vmul.f32 %v936, %v936
          %v969 = vmul.f32 %v937, %v937
          %v970 = vmul.f32 %v938, %v938
          %v971 = vmul.f32 %v939, %v939
          %v972 = vmul.f32 %v940, %v940
          %v973 = vmul.f32 %v941, %v941
          %v974 = vmul.f32 %v942, %v942
          %v975 = vmul.f32 %v943, %v943
          %v976 = vmul.f32 %v944, %v944
          %v977 = vmul.f32 %v945, %v945
          %v978 = vmul.f32 %v946, %v946
          %v979 = vmul.f32 %v947, %v947
          %v980 = vadd.f32 %v948, %v964
          %v981 = vadd.f32 %v949, %v965
          %v982 = vadd.f32 %v950, %v966
          %v983 = vadd.f32 %v951, %v967
          %v984 = vadd.f32 %v952, %v968
          %v985 = vadd.f32 %v953, %v969
          %v986 = vadd.f32 %v954, %v970
          %v987 = vadd.f32 %v955, %v971
          %v988 = vadd.f32 %v956, %v972
          %v989 = vadd.f32 %v957, %v973
          %v990 = vadd.f32 %v958, %v974
          %v991 = vadd.f32 %v959, %v975
          %v992 = vadd.f32 %v960, %v976
          %v993 = vadd.f32 %v961, %v977
          %v994 = vadd.f32 %v962, %v978
          %v995 = vadd.f32 %v963, %v979
          %v996 = vmul.f32 %v964, %v964
          %v997 = vmul.f32 %v965, %v965
          %v998 = vmul.f32 %v966, %v966
          %v999 = vmul.f32 %v967, %v967
          %v1000 = vmul.f32 %v968, %v968
          %v1001 = vmul.f32 %v969, %v969
          %v1002 = vmul.f32 %v970, %v970
          %v1003 = vmul.f32 %v971, %v971
          %v1004 = vmul.f32 %v972, %v972
          %v1005 = vmul.f32 %v973, %v973
          %v1006 = vmul.f32 %v974, %v974
          %v1007 = vmul.f32 %v975, %v975
          %v1008 = vmul.f32 %v976, %v976
          %v1009 = vmul.f32 %v977, %v977
          %v1010 = vmul.f32 %v978, %v978
          %v1011 = vmul.f32 %v979, %v979
          %v1012 = vadd.f32 %v980, %v996
          %v1013 = vadd.f32 %v981, %v997
          %v1014 = vadd.f32 %v982, %v998
          %v1015 = vadd.f32 %v983, %v999
          %v1016 = vadd.f32 %v984, %v1000
          %v1017 = vadd.f32 %v985, %v1001
          %v1018 = vadd.f32 %v986, %v1002
          %v1019 = vadd.f32 %v987, %v1003
          %v1020 = vadd.f32 %v988, %v1004
          %v1021 = vadd.f32 %v989, %v1005
          %v1022 = vadd.f32 %v990, %v1006
          %v1023 = vadd.f32 %v991, %v1007
          %v1024 = vadd.f32 %v992, %v1008
          %v1025 = vadd.f32 %v993, %v1009
          %v1026 = vadd.f32 %v994, %v1010
          %v1027 = vadd.f32 %v995, %v1011
          %1028 = vst [vmem:[#allocation2] sm:$0xff] %v1012
          %1029 = vst [vmem:[#allocation2 + $0x8] sm:$0xff] %v1013
          %1030 = vst [vmem:[#allocation2 + $0x10] sm:$0xff] %v1014
          %1031 = vst [vmem:[#allocation2 + $0x18] sm:$0xff] %v1015
          %1032 = vst [vmem:[#allocation2 + $0x20] sm:$0xff] %v1016
          %1033 = vst [vmem:[#allocation2 + $0x28] sm:$0xff] %v1017
          %1034 = vst [vmem:[#allocation2 + $0x30] sm:$0xff] %v1018
          %1035 = vst [vmem:[#allocation2 + $0x38] sm:$0xff] %v1019
          %1036 = vst [vmem:[#allocation2 + $0x40] sm:$0xff] %v1020
          %1037 = vst [vmem:[#allocation2 + $0x48] sm:$0xff] %v1021
          %1038 = vst [vmem:[#allocation2 + $0x50] sm:$0xff] %v1022
          %1039 = vst [vmem:[#allocation2 + $0x58] sm:$0xff] %v1023
          %1040 = vst [vmem:[#allocation2 + $0x60] sm:$0xff] %v1024
          %1041 = vst [vmem:[#allocation2 + $0x68] sm:$0xff] %v1025
          %1042 = vst [vmem:[#allocation2 + $0x70] sm:$0xff] %v1026
          %1043 = vst [vmem:[#allocation2 + $0x78] sm:$0xff] %v1027
          %1044 = vst [vmem:[%s379] sm:$0xff] %v1012
          %1045 = vst [vmem:[%s379 + $0x8] sm:$0xff] %v1013
          %1046 = vst [vmem:[%s379 + $0x10] sm:$0xff] %v1014
          %1047 = vst [vmem:[%s379 + $0x18] sm:$0xff] %v1015
          %1048 = vst [vmem:[%s379 + $0x20] sm:$0xff] %v1016
          %1049 = vst [vmem:[%s379 + $0x28] sm:$0xff] %v1017
          %1050 = vst [vmem:[%s379 + $0x30] sm:$0xff] %v1018
          %1051 = vst [vmem:[%s379 + $0x38] sm:$0xff] %v1019
          %1052 = vst [vmem:[%s379 + $0x40] sm:$0xff] %v1020
          %1053 = vst [vmem:[%s379 + $0x48] sm:$0xff] %v1021
          %1054 = vst [vmem:[%s379 + $0x50] sm:$0xff] %v1022
          %1055 = vst [vmem:[%s379 + $0x58] sm:$0xff] %v1023
          %1056 = vst [vmem:[%s379 + $0x60] sm:$0xff] %v1024
          %1057 = vst [vmem:[%s379 + $0x68] sm:$0xff] %v1025
          %1058 = vst [vmem:[%s379 + $0x70] sm:$0xff] %v1026
          %1059 = vst [vmem:[%s379 + $0x78] sm:$0xff] %v1027
        $region85: #{tpu_custom_call.1} parent=76 // pred_fallthru
          _
        %p1060 = scmp.eq.s32.totalorder %s37, 1
        // Predicated region
        $region86: #{tpu_custom_call.1} parent=76 // pred_check
          %p1061 = pneg %p1060
        $region87: #{tpu_custom_call.1} parent=76 // pred_check_branch
          %1063 = sbr.rel (%p1061) target = $region89
        $region88: #{tpu_custom_call.1} parent=76 // pred_region
          %v1064 = vld [vmem:[#allocation2] sm:$0xff]
          %v1065 = vld [vmem:[#allocation2 + $0x8] sm:$0xff]
          %v1066 = vld [vmem:[#allocation2 + $0x10] sm:$0xff]
          %v1067 = vld [vmem:[#allocation2 + $0x18] sm:$0xff]
          %v1068 = vld [vmem:[#allocation2 + $0x20] sm:$0xff]
          %v1069 = vld [vmem:[#allocation2 + $0x28] sm:$0xff]
          %v1070 = vld [vmem:[#allocation2 + $0x30] sm:$0xff]
          %v1071 = vld [vmem:[#allocation2 + $0x38] sm:$0xff]
          %v1072 = vld [vmem:[#allocation2 + $0x40] sm:$0xff]
          %v1073 = vld [vmem:[#allocation2 + $0x48] sm:$0xff]
          %v1074 = vld [vmem:[#allocation2 + $0x50] sm:$0xff]
          %v1075 = vld [vmem:[#allocation2 + $0x58] sm:$0xff]
          %v1076 = vld [vmem:[#allocation2 + $0x60] sm:$0xff]
          %v1077 = vld [vmem:[#allocation2 + $0x68] sm:$0xff]
          %v1078 = vld [vmem:[#allocation2 + $0x70] sm:$0xff]
          %v1079 = vld [vmem:[#allocation2 + $0x78] sm:$0xff]
          %1080 = vxpose.xlu0.b32.start [1/16] %v1064, 128
          %1081 = vxpose.xlu0.b32.cont [2/16] %v1065, 128
          %1082 = vxpose.xlu0.b32.cont [3/16] %v1066, 128
          %1083 = vxpose.xlu0.b32.cont [4/16] %v1067, 128
          %1084 = vxpose.xlu0.b32.cont [5/16] %v1068, 128
          %1085 = vxpose.xlu0.b32.cont [6/16] %v1069, 128
          %1086 = vxpose.xlu0.b32.cont [7/16] %v1070, 128
          %1087 = vxpose.xlu0.b32.cont [8/16] %v1071, 128
          %1088 = vxpose.xlu0.b32.cont [9/16] %v1072, 128
          %1089 = vxpose.xlu0.b32.cont [10/16] %v1073, 128
          %1090 = vxpose.xlu0.b32.cont [11/16] %v1074, 128
          %1091 = vxpose.xlu0.b32.cont [12/16] %v1075, 128
          %1092 = vxpose.xlu0.b32.cont [13/16] %v1076, 128
          %1093 = vxpose.xlu0.b32.cont [14/16] %v1077, 128
          %1094 = vxpose.xlu0.b32.cont [15/16] %v1078, 128
          %1095 = vxpose.xlu0.b32.end [16/16] %v1079, 128
          %v1096 = vpop.trf.xlu0
          %v1097 = vpop.trf.xlu0
          %v1098 = vpop.trf.xlu0
          %v1099 = vpop.trf.xlu0
          %v1100 = vpop.trf.xlu0
          %v1101 = vpop.trf.xlu0
          %v1102 = vpop.trf.xlu0
          %v1103 = vpop.trf.xlu0
          %v1104 = vpop.trf.xlu0
          %v1105 = vpop.trf.xlu0
          %v1106 = vpop.trf.xlu0
          %v1107 = vpop.trf.xlu0
          %v1108 = vpop.trf.xlu0
          %v1109 = vpop.trf.xlu0
          %v1110 = vpop.trf.xlu0
          %v1111 = vpop.trf.xlu0
          %1112 = vst [vmem:[%s379] sm:$0xff] %v1096
          %1113 = vst [vmem:[%s379 + $0x8] sm:$0xff] %v1097
          %1114 = vst [vmem:[%s379 + $0x10] sm:$0xff] %v1098
          %1115 = vst [vmem:[%s379 + $0x18] sm:$0xff] %v1099
          %1116 = vst [vmem:[%s379 + $0x20] sm:$0xff] %v1100
          %1117 = vst [vmem:[%s379 + $0x28] sm:$0xff] %v1101
          %1118 = vst [vmem:[%s379 + $0x30] sm:$0xff] %v1102
          %1119 = vst [vmem:[%s379 + $0x38] sm:$0xff] %v1103
          %1120 = vst [vmem:[%s379 + $0x40] sm:$0xff] %v1104
          %1121 = vst [vmem:[%s379 + $0x48] sm:$0xff] %v1105
          %1122 = vst [vmem:[%s379 + $0x50] sm:$0xff] %v1106
          %1123 = vst [vmem:[%s379 + $0x58] sm:$0xff] %v1107
          %1124 = vst [vmem:[%s379 + $0x60] sm:$0xff] %v1108
          %1125 = vst [vmem:[%s379 + $0x68] sm:$0xff] %v1109
          %1126 = vst [vmem:[%s379 + $0x70] sm:$0xff] %v1110
          %1127 = vst [vmem:[%s379 + $0x78] sm:$0xff] %v1111
        $region89: #{tpu_custom_call.1} parent=76 // pred_fallthru
          _
        %s1128 = sand.u32 %s203, 1
        %s1129 = scalar_lea.sflag [#allocation9], %s1128
        %s1130 = sand.u32 %s203, 1
        %s1131 = smul.addr %s1130, 128
        %s1132 = scalar_lea.vmem [#allocation8], %s1131
        // Predicated region
        $region90: #{tpu_custom_call.1} parent=76 // pred_check
          %p1133 = pneg %p213
        $region91: #{tpu_custom_call.1} parent=76 // pred_check_branch
          %1135 = sbr.rel (%p1133) target = $region93
        $region92: #{tpu_custom_call.1} parent=76 // pred_region
          %s1136 = sld [smem:[#allocation4 + %s36]]
          %s1137 = sld [smem:[#allocation5 + %s36]]
          %s1138 = ssub.s32 %s1137, %s1136
          %s1139 = smul.u32 %s37, %s1138
          %s1140 = sadd.s32 %s1136, %s1139
          %s1141 = ssub.s32 %s1136, %s1137
          %s1142 = smul.u32 %s37, %s1141
          %s1143 = sadd.s32 %s1137, %s1142
          %s1144 = smul.u32 16, %s1140
          %s1146 = ssub.s32 2048, 2048
          %1147 = vsyncadd %s1129, %s1146
          %s1148 = smul.addr %s1144, 3
          %s1149 = sadd.s32 %s1143, %s1148
          %s1150 = smul.addr %s1149, 128
          %s1151 = scalar_lea.hbm %s7, %s1150
          %s1152 = sshll.u32 %s1132, 4
          %s1153 = int_to_ptr.vmem [resolvable:$true] %s1152
          %1158 = dma.vmem_to_hbm [thread:$0]  %s1153, 2048, %s1151, %s1129, 128, 384, 8
        $region93: #{tpu_custom_call.1} parent=76 // pred_fallthru
          _
      $region77: #{tpu_custom_call.1} parent=5 // pred_fallthru
        _
      %p1159 = scmp.le.s32.totalorder 2, %s27
      // Predicated region
      $region94: #{tpu_custom_call.1} parent=5 // pred_check
        %p1160 = pneg %p1159
      $region95: #{tpu_custom_call.1} parent=5 // pred_check_branch
        %1162 = sbr.rel (%p1160) target = $region97
      $region96: #{tpu_custom_call.1} parent=5 // pred_region
        %s1163 = ssub.s32 %s27, 2
        // Predicated region
        $region98: #{tpu_custom_call.1} parent=96 // pred_check
          %p1164 = pneg %p219
        $region99: #{tpu_custom_call.1} parent=96 // pred_check_branch
          %1166 = sbr.rel (%p1164) target = $region101
        $region100: #{tpu_custom_call.1} parent=96 // pred_region
          %s1167 = sand.u32 %s204, 1
          %s1168 = scalar_lea.sflag [#allocation9], %s1167
          %s1169 = sand.u32 %s204, 1
          %s1170 = smul.addr %s1169, 128
          %s1171 = scalar_lea.vmem [#allocation8], %s1170
          %1172 = dma.done %s1168, 2048
        $region101: #{tpu_custom_call.1} parent=96 // pred_fallthru
          _
      $region97: #{tpu_custom_call.1} parent=5 // pred_fallthru
        _
    $region6: #{tpu_custom_call.1} parent=1 // loop_footer
      %s31 = sadd.s32 1, %s27
    $region7: #{tpu_custom_call.1} parent=1 // loop_footer_branch
      %26 = sbr.rel target = $region3
    $region8: #{tpu_custom_call.1} parent=1 // loop_exit
      _
    %1173 = vsyncpa [#allocation9], 1
    %s1174 = scalar_lea.sflag [#allocation9], 1
    %1175 = vsyncpa %s1174, 1

</llo_original>
